<compile_context>
chip_gen: v7x
topology: tpu7x:2x2x1
jax: 0.10.0
libtpu: 0.0.40
codegen_flags: <defaults>
</compile_context>

<pallas_src>
import jax
import jax.numpy as jnp
from jax.experimental import pallas as pl
from jax.experimental.pallas import tpu as pltpu

# Small, TPU-friendly stand-in sizes consistent with the module's structure.
INPUT_SIZE = 256    # stands in for 2048
HIDDEN_SIZE = 128   # stands in for 500
OUTPUT_SIZE = 128   # stands in for 100
FINAL_SIZE = 64     # stands in for 50
FINAL_PAD = 128     # lane-dense padding of FINAL_SIZE for unmasked stores
BATCH = 16


def visae_kernel(x_ref,
                 w1, b1, w2, b2,     # encoder
                 w35, b35,           # fused decoder-layer-1 + transformation
                 w4, b4,             # decoder layer 2
                 h_ref, out_ref, t_ref):
    bf16 = jnp.bfloat16
    x = x_ref[...]                                   # bf16 (tb, INPUT)

    # encoder: Linear -> ReLU -> Linear -> ReLU   (bf16 MXU operands, f32 acc)
    z1 = jnp.dot(x, w1[...], preferred_element_type=jnp.float32) + b1[...]
    a1 = jnp.maximum(z1, 0.0)
    z2 = jnp.dot(a1.astype(bf16), w2[...],
                 preferred_element_type=jnp.float32) + b2[...]
    h = jnp.maximum(z2, 0.0)                         # (tb, OUTPUT) f32

    # fused: [decoder layer 1 | transformation] from h in a single matmul
    z35 = jnp.dot(h.astype(bf16), w35[...],
                  preferred_element_type=jnp.float32) + b35[...]
    d1 = jnp.maximum(z35[:, :HIDDEN_SIZE], 0.0)      # decoder hidden (ReLU)
    t = jnp.tanh(z35[:, HIDDEN_SIZE:])               # transformation (tanh, padded)

    # decoder layer 2: Linear -> ReLU
    z4 = jnp.dot(d1.astype(bf16), w4[...],
                 preferred_element_type=jnp.float32) + b4[...]
    out = jnp.maximum(z4, 0.0)                       # (tb, INPUT) f32

    h_ref[...] = h.astype(h_ref.dtype)
    out_ref[...] = out.astype(out_ref.dtype)
    t_ref[...] = t.astype(t_ref.dtype)


def prepare_params(params):
    """One-time param prep: transpose to (in,out), pad w5/b5 to FINAL_PAD lanes,
    fuse w3||w5 and b3||b5, cast weights to bf16 (biases stay f32)."""
    bf16, f32 = jnp.bfloat16, jnp.float32
    w5t = jnp.pad(params["w5"].T, ((0, 0), (0, FINAL_PAD - FINAL_SIZE)))
    b5p = jnp.pad(params["b5"], (0, FINAL_PAD - FINAL_SIZE))
    return {
        "w1": params["w1"].T.astype(bf16),                      # (IN, HID)
        "b1": params["b1"].reshape(1, -1).astype(f32),
        "w2": params["w2"].T.astype(bf16),                      # (HID, OUT)
        "b2": params["b2"].reshape(1, -1).astype(f32),
        "w35": jnp.concatenate([params["w3"].T, w5t], axis=1).astype(bf16),
        "b35": jnp.concatenate([params["b3"], b5p]).reshape(1, -1).astype(f32),
        "w4": params["w4"].T.astype(bf16),                      # (HID, IN)
        "b4": params["b4"].reshape(1, -1).astype(f32),
    }


def visae_forward(x, prepped):
    """x: (B, INPUT_SIZE) f32. prepped: output of prepare_params()."""
    B, in_dim = x.shape
    assert in_dim == INPUT_SIZE
    tile_b = B if B <= 128 else 128          # single grid step at small batch
    assert B % tile_b == 0 and tile_b % 8 == 0

    x_bf = x.astype(jnp.bfloat16)
    flat_args = (x_bf,
                 prepped["w1"], prepped["b1"], prepped["w2"], prepped["b2"],
                 prepped["w35"], prepped["b35"],
                 prepped["w4"], prepped["b4"])

    def full_spec(a):
        # Whole-array block (satisfies the (8,128) rule by using full dims).
        return pl.BlockSpec(a.shape, lambda i, nd=len(a.shape): (0,) * nd)

    in_specs = [pl.BlockSpec((tile_b, INPUT_SIZE), lambda i: (i, 0))] + \
               [full_spec(a) for a in flat_args[1:]]

    out_shapes = (
        jax.ShapeDtypeStruct((B, OUTPUT_SIZE), jnp.float32),   # h
        jax.ShapeDtypeStruct((B, INPUT_SIZE), jnp.float32),    # out
        jax.ShapeDtypeStruct((B, FINAL_PAD), jnp.float32),     # t_out (padded)
    )
    out_specs = (
        pl.BlockSpec((tile_b, OUTPUT_SIZE), lambda i: (i, 0)),
        pl.BlockSpec((tile_b, INPUT_SIZE), lambda i: (i, 0)),
        pl.BlockSpec((tile_b, FINAL_PAD), lambda i: (i, 0)),
    )

    h, out, t_pad = pl.pallas_call(
        visae_kernel,
        out_shape=out_shapes,
        grid_spec=pltpu.PrefetchScalarGridSpec(
            num_scalar_prefetch=0,
            grid=(B // tile_b,),
            in_specs=in_specs,
            out_specs=out_specs,
        ),
        compiler_params=pltpu.CompilerParams(
            dimension_semantics=("parallel",)),
    )(*flat_args)

    return h, out, t_pad[:, :FINAL_SIZE]


def init_params(key):
    """Deterministic params with PyTorch nn.Linear shapes: W (out,in), b (out,)."""
    shapes = {
        "w1": (HIDDEN_SIZE, INPUT_SIZE),  "b1": (HIDDEN_SIZE,),
        "w2": (OUTPUT_SIZE, HIDDEN_SIZE), "b2": (OUTPUT_SIZE,),
        "w3": (HIDDEN_SIZE, OUTPUT_SIZE), "b3": (HIDDEN_SIZE,),
        "w4": (INPUT_SIZE, HIDDEN_SIZE),  "b4": (INPUT_SIZE,),
        "w5": (FINAL_SIZE, OUTPUT_SIZE),  "b5": (FINAL_SIZE,),
    }
    params = {}
    for name, shape in sorted(shapes.items()):
        key, sub = jax.random.split(key)
        fan_in = shape[-1] if len(shape) == 2 else 1
        scale = 1.0 / jnp.sqrt(jnp.float32(max(fan_in, 1)))
        params[name] = (scale * jax.random.uniform(
            sub, shape, jnp.float32, -1.0, 1.0)).astype(jnp.float32)
    return params


def visae_reference(x, p):
    """Pure-JAX f32 reference matching the PyTorch forward."""
    a1 = jnp.maximum(x @ p["w1"].T + p["b1"], 0.0)
    h = jnp.maximum(a1 @ p["w2"].T + p["b2"], 0.0)
    d1 = jnp.maximum(h @ p["w3"].T + p["b3"], 0.0)
    out = jnp.maximum(d1 @ p["w4"].T + p["b4"], 0.0)
    t = jnp.tanh(h @ p["w5"].T + p["b5"])
    return h, out, t


if __name__ == "__main__":
    key = jax.random.PRNGKey(0)
    key, kx = jax.random.split(key)
    x = jax.random.normal(kx, (BATCH, INPUT_SIZE), jnp.float32)
    params = init_params(key)
    prepped = prepare_params(params)   # one-time prep, outside the fwd path

    h, out, t_out = visae_forward(x, prepped)
    jax.block_until_ready((h, out, t_out))

    h_ref, out_ref, t_ref = visae_reference(x, params)
    assert h.shape == (BATCH, OUTPUT_SIZE)
    assert out.shape == (BATCH, INPUT_SIZE)
    assert t_out.shape == (BATCH, FINAL_SIZE)
    # bf16 MXU operands (f32 accumulation) -> loosened tolerance vs f32 ref.
    assert jnp.allclose(h, h_ref, atol=5e-2, rtol=5e-2)
    assert jnp.allclose(out, out_ref, atol=5e-2, rtol=5e-2)
    assert jnp.allclose(t_out, t_ref, atol=5e-2, rtol=5e-2)

    print("KERNEL_OK")
</pallas_src>

<mosaic_0001>
module attributes {stable_mosaic.version = 11 : i64} {
  func.func @visae_kernel(%arg0: i32, %arg1: memref<16x256xbf16, #tpu.memory_space<vmem>>, %arg2: memref<256x128xbf16, #tpu.memory_space<vmem>>, %arg3: memref<1x128xf32, #tpu.memory_space<vmem>>, %arg4: memref<128x128xbf16, #tpu.memory_space<vmem>>, %arg5: memref<1x128xf32, #tpu.memory_space<vmem>>, %arg6: memref<128x256xbf16, #tpu.memory_space<vmem>>, %arg7: memref<1x256xf32, #tpu.memory_space<vmem>>, %arg8: memref<128x256xbf16, #tpu.memory_space<vmem>>, %arg9: memref<1x256xf32, #tpu.memory_space<vmem>>, %arg10: memref<16x128xf32, #tpu.memory_space<vmem>>, %arg11: memref<16x256xf32, #tpu.memory_space<vmem>>, %arg12: memref<16x128xf32, #tpu.memory_space<vmem>>) attributes {dimension_semantics = [#tpu.dimension_semantics<parallel>], iteration_bounds = array<i64: 1>, scalar_prefetch = 0 : i64, scratch_operands = 0 : i64, tpu.core_type = #tpu.core_type<tc>, window_params = [{transform_indices = @transform_0, window_bounds = array<i64: 16, 256>}, {pipeline_mode = #tpu.pipeline_mode<synchronous>, transform_indices = @transform_1, window_bounds = array<i64: 256, 128>}, {pipeline_mode = #tpu.pipeline_mode<synchronous>, transform_indices = @transform_2, window_bounds = array<i64: 1, 128>}, {pipeline_mode = #tpu.pipeline_mode<synchronous>, transform_indices = @transform_3, window_bounds = array<i64: 128, 128>}, {pipeline_mode = #tpu.pipeline_mode<synchronous>, transform_indices = @transform_4, window_bounds = array<i64: 1, 128>}, {pipeline_mode = #tpu.pipeline_mode<synchronous>, transform_indices = @transform_5, window_bounds = array<i64: 128, 256>}, {pipeline_mode = #tpu.pipeline_mode<synchronous>, transform_indices = @transform_6, window_bounds = array<i64: 1, 256>}, {pipeline_mode = #tpu.pipeline_mode<synchronous>, transform_indices = @transform_7, window_bounds = array<i64: 128, 256>}, {pipeline_mode = #tpu.pipeline_mode<synchronous>, transform_indices = @transform_8, window_bounds = array<i64: 1, 256>}, {transform_indices = @transform_9, window_bounds = array<i64: 16, 128>}, {transform_indices = @transform_10, window_bounds = array<i64: 16, 256>}, {transform_indices = @transform_11, window_bounds = array<i64: 16, 128>}]} {
    %c0 = arith.constant 0 : index
    %c0_0 = arith.constant 0 : index
    %0 = vector.load %arg1[%c0, %c0_0] : memref<16x256xbf16, #tpu.memory_space<vmem>>, vector<16x256xbf16>
    %c0_1 = arith.constant 0 : index
    %c0_2 = arith.constant 0 : index
    %1 = vector.load %arg2[%c0_1, %c0_2] : memref<256x128xbf16, #tpu.memory_space<vmem>>, vector<256x128xbf16>
    %cst = arith.constant dense<0.000000e+00> : vector<16x128xf32>
    %2 = tpu.matmul %0, %1, %cst {dimension_numbers = #tpu.dot_dimension_numbers<[1], [0], [0], [1], [0, 0, 1, 1], [], []>} : vector<16x256xbf16>, vector<256x128xbf16>, vector<16x128xf32> -> vector<16x128xf32>
    %c0_3 = arith.constant 0 : index
    %c0_4 = arith.constant 0 : index
    %3 = vector.load %arg3[%c0_3, %c0_4] : memref<1x128xf32, #tpu.memory_space<vmem>>, vector<1x128xf32>
    %4 = vector.broadcast %3 : vector<1x128xf32> to vector<16x128xf32>
    %5 = arith.addf %2, %4 : vector<16x128xf32>
    %cst_5 = arith.constant 0.000000e+00 : f32
    %6 = vector.broadcast %cst_5 : f32 to vector<16x128xf32>
    %7 = arith.maximumf %5, %6 : vector<16x128xf32>
    %8 = arith.truncf %7 : vector<16x128xf32> to vector<16x128xbf16>
    %c0_6 = arith.constant 0 : index
    %c0_7 = arith.constant 0 : index
    %9 = vector.load %arg4[%c0_6, %c0_7] : memref<128x128xbf16, #tpu.memory_space<vmem>>, vector<128x128xbf16>
    %cst_8 = arith.constant dense<0.000000e+00> : vector<16x128xf32>
    %10 = tpu.matmul %8, %9, %cst_8 {dimension_numbers = #tpu.dot_dimension_numbers<[1], [0], [0], [1], [0, 0, 1, 1], [], []>} : vector<16x128xbf16>, vector<128x128xbf16>, vector<16x128xf32> -> vector<16x128xf32>
    %c0_9 = arith.constant 0 : index
    %c0_10 = arith.constant 0 : index
    %11 = vector.load %arg5[%c0_9, %c0_10] : memref<1x128xf32, #tpu.memory_space<vmem>>, vector<1x128xf32>
    %12 = vector.broadcast %11 : vector<1x128xf32> to vector<16x128xf32>
    %13 = arith.addf %10, %12 : vector<16x128xf32>
    %cst_11 = arith.constant 0.000000e+00 : f32
    %14 = vector.broadcast %cst_11 : f32 to vector<16x128xf32>
    %15 = arith.maximumf %13, %14 : vector<16x128xf32>
    %16 = arith.truncf %15 : vector<16x128xf32> to vector<16x128xbf16>
    %c0_12 = arith.constant 0 : index
    %c0_13 = arith.constant 0 : index
    %17 = vector.load %arg6[%c0_12, %c0_13] : memref<128x256xbf16, #tpu.memory_space<vmem>>, vector<128x256xbf16>
    %cst_14 = arith.constant dense<0.000000e+00> : vector<16x256xf32>
    %18 = tpu.matmul %16, %17, %cst_14 {dimension_numbers = #tpu.dot_dimension_numbers<[1], [0], [0], [1], [0, 0, 1, 1], [], []>} : vector<16x128xbf16>, vector<128x256xbf16>, vector<16x256xf32> -> vector<16x256xf32>
    %c0_15 = arith.constant 0 : index
    %c0_16 = arith.constant 0 : index
    %19 = vector.load %arg7[%c0_15, %c0_16] : memref<1x256xf32, #tpu.memory_space<vmem>>, vector<1x256xf32>
    %20 = vector.broadcast %19 : vector<1x256xf32> to vector<16x256xf32>
    %21 = arith.addf %18, %20 : vector<16x256xf32>
    %22 = vector.extract_strided_slice %21 {offsets = [0, 0], sizes = [16, 128], strides = [1, 1]} : vector<16x256xf32> to vector<16x128xf32>
    %cst_17 = arith.constant 0.000000e+00 : f32
    %23 = vector.broadcast %cst_17 : f32 to vector<16x128xf32>
    %24 = arith.maximumf %22, %23 : vector<16x128xf32>
    %25 = vector.extract_strided_slice %21 {offsets = [0, 128], sizes = [16, 128], strides = [1, 1]} : vector<16x256xf32> to vector<16x128xf32>
    %26 = math.tanh %25 : vector<16x128xf32>
    %27 = arith.truncf %24 : vector<16x128xf32> to vector<16x128xbf16>
    %c0_18 = arith.constant 0 : index
    %c0_19 = arith.constant 0 : index
    %28 = vector.load %arg8[%c0_18, %c0_19] : memref<128x256xbf16, #tpu.memory_space<vmem>>, vector<128x256xbf16>
    %cst_20 = arith.constant dense<0.000000e+00> : vector<16x256xf32>
    %29 = tpu.matmul %27, %28, %cst_20 {dimension_numbers = #tpu.dot_dimension_numbers<[1], [0], [0], [1], [0, 0, 1, 1], [], []>} : vector<16x128xbf16>, vector<128x256xbf16>, vector<16x256xf32> -> vector<16x256xf32>
    %c0_21 = arith.constant 0 : index
    %c0_22 = arith.constant 0 : index
    %30 = vector.load %arg9[%c0_21, %c0_22] : memref<1x256xf32, #tpu.memory_space<vmem>>, vector<1x256xf32>
    %31 = vector.broadcast %30 : vector<1x256xf32> to vector<16x256xf32>
    %32 = arith.addf %29, %31 : vector<16x256xf32>
    %cst_23 = arith.constant 0.000000e+00 : f32
    %33 = vector.broadcast %cst_23 : f32 to vector<16x256xf32>
    %34 = arith.maximumf %32, %33 : vector<16x256xf32>
    %c0_24 = arith.constant 0 : index
    %c0_25 = arith.constant 0 : index
    %35 = vector.load %arg10[%c0_24, %c0_25] : memref<16x128xf32, #tpu.memory_space<vmem>>, vector<16x128xf32>
    tpu.vector_store %arg10[%c0_24, %c0_25], %15 {strides = array<i32>} : memref<16x128xf32, #tpu.memory_space<vmem>>, vector<16x128xf32>,
    %c0_26 = arith.constant 0 : index
    %c0_27 = arith.constant 0 : index
    %36 = vector.load %arg11[%c0_26, %c0_27] : memref<16x256xf32, #tpu.memory_space<vmem>>, vector<16x256xf32>
    tpu.vector_store %arg11[%c0_26, %c0_27], %34 {strides = array<i32>} : memref<16x256xf32, #tpu.memory_space<vmem>>, vector<16x256xf32>,
    %c0_28 = arith.constant 0 : index
    %c0_29 = arith.constant 0 : index
    %37 = vector.load %arg12[%c0_28, %c0_29] : memref<16x128xf32, #tpu.memory_space<vmem>>, vector<16x128xf32>
    tpu.vector_store %arg12[%c0_28, %c0_29], %26 {strides = array<i32>} : memref<16x128xf32, #tpu.memory_space<vmem>>, vector<16x128xf32>,
    return
  }
  func.func @transform_0(%arg0: i32) -> (i32, i32) {
    %c0_i32 = arith.constant 0 : i32
    %c0_i32_0 = arith.constant 0 : i32
    return %arg0, %c0_i32 : i32, i32
  }
  func.func @transform_1(%arg0: i32) -> (i32, i32) {
    %c0_i32 = arith.constant 0 : i32
    %c0_i32_0 = arith.constant 0 : i32
    %c0_i32_1 = arith.constant 0 : i32
    return %c0_i32, %c0_i32_0 : i32, i32
  }
  func.func @transform_2(%arg0: i32) -> (i32, i32) {
    %c0_i32 = arith.constant 0 : i32
    %c0_i32_0 = arith.constant 0 : i32
    %c0_i32_1 = arith.constant 0 : i32
    return %c0_i32, %c0_i32_0 : i32, i32
  }
  func.func @transform_3(%arg0: i32) -> (i32, i32) {
    %c0_i32 = arith.constant 0 : i32
    %c0_i32_0 = arith.constant 0 : i32
    %c0_i32_1 = arith.constant 0 : i32
    return %c0_i32, %c0_i32_0 : i32, i32
  }
  func.func @transform_4(%arg0: i32) -> (i32, i32) {
    %c0_i32 = arith.constant 0 : i32
    %c0_i32_0 = arith.constant 0 : i32
    %c0_i32_1 = arith.constant 0 : i32
    return %c0_i32, %c0_i32_0 : i32, i32
  }
  func.func @transform_5(%arg0: i32) -> (i32, i32) {
    %c0_i32 = arith.constant 0 : i32
    %c0_i32_0 = arith.constant 0 : i32
    %c0_i32_1 = arith.constant 0 : i32
    return %c0_i32, %c0_i32_0 : i32, i32
  }
  func.func @transform_6(%arg0: i32) -> (i32, i32) {
    %c0_i32 = arith.constant 0 : i32
    %c0_i32_0 = arith.constant 0 : i32
    %c0_i32_1 = arith.constant 0 : i32
    return %c0_i32, %c0_i32_0 : i32, i32
  }
  func.func @transform_7(%arg0: i32) -> (i32, i32) {
    %c0_i32 = arith.constant 0 : i32
    %c0_i32_0 = arith.constant 0 : i32
    %c0_i32_1 = arith.constant 0 : i32
    return %c0_i32, %c0_i32_0 : i32, i32
  }
  func.func @transform_8(%arg0: i32) -> (i32, i32) {
    %c0_i32 = arith.constant 0 : i32
    %c0_i32_0 = arith.constant 0 : i32
    %c0_i32_1 = arith.constant 0 : i32
    return %c0_i32, %c0_i32_0 : i32, i32
  }
  func.func @transform_9(%arg0: i32) -> (i32, i32) {
    %c0_i32 = arith.constant 0 : i32
    %c0_i32_0 = arith.constant 0 : i32
    return %arg0, %c0_i32 : i32, i32
  }
  func.func @transform_10(%arg0: i32) -> (i32, i32) {
    %c0_i32 = arith.constant 0 : i32
    %c0_i32_0 = arith.constant 0 : i32
    return %arg0, %c0_i32 : i32, i32
  }
  func.func @transform_11(%arg0: i32) -> (i32, i32) {
    %c0_i32 = arith.constant 0 : i32
    %c0_i32_0 = arith.constant 0 : i32
    return %arg0, %c0_i32 : i32, i32
  }
}

</mosaic_0001>

<llo_original>
// kernel: tpu_custom_call.1
$region0: #{tpu_custom_call.1}
  #allocation0 [shape = 'u32[]', space=smem, size = 0x4, offset = 0x4, fixed_abs, tag = 'smem constant byte address 0x4 - core index']
  #allocation1 [shape = 'u32[144,128]{1,0:T(1,128)}', space=vmem, size = 0x12000, scoped, tag = 'internal scratch']
  %s0 = inlined_call_operand.hbm [shape: bf16[16,256], index: 0, kind: input, shape index: {}]
  %s1 = inlined_call_operand.hbm [shape: bf16[256,128], index: 1, kind: input, shape index: {}]
  %s2 = inlined_call_operand.vmem [shape: f32[1,128], index: 2, kind: input, shape index: {}]
  %s3 = inlined_call_operand.hbm [shape: bf16[128,128], index: 3, kind: input, shape index: {}]
  %s4 = inlined_call_operand.vmem [shape: f32[1,128], index: 4, kind: input, shape index: {}]
  %s5 = inlined_call_operand.hbm [shape: bf16[128,256], index: 5, kind: input, shape index: {}]
  %s6 = inlined_call_operand.vmem [shape: f32[1,256], index: 6, kind: input, shape index: {}]
  %s7 = inlined_call_operand.hbm [shape: bf16[128,256], index: 7, kind: input, shape index: {}]
  %s8 = inlined_call_operand.vmem [shape: f32[1,256], index: 8, kind: input, shape index: {}]
  %s9 = inlined_call_operand.hbm [shape: f32[16,128], index: 9, kind: output, shape index: {0}]
  %s10 = inlined_call_operand.hbm [shape: f32[16,256], index: 10, kind: output, shape index: {1}]
  %s11 = inlined_call_operand.hbm [shape: f32[16,128], index: 11, kind: output, shape index: {2}]
  %12 = xla_tuple %s9, %s10, %s11
  %s13 = sld [smem:[#allocation0]]
  $region82: #{tpu_custom_call.1} parent=0
    _
  %s15 = ssub.s32 1, %s13
  %s16 = scalar_select 0, %s15, %s13
  $region1: #{tpu_custom_call.1} parent=0
    #allocation2 [shape = 'u8[8192]{0}', space=vmem, size = 0x2000, scoped, tag = 'input window, operand 0, single buffered']
    #allocation3 [shape = 's32[1]{0}', space=sflag, size = 0x4, scoped, tag = 'scoped memory for tpu_custom_call.1']
    #allocation4 [shape = 's32[1]{0}', space=sflag, size = 0x4, scoped, tag = 'scoped memory for tpu_custom_call.1']
    #allocation5 [shape = 'u8[65536]{0}', space=vmem, size = 0x10000, scoped, tag = 'input window, operand 1, single buffered']
    #allocation6 [shape = 's32[1]{0}', space=sflag, size = 0x4, scoped, tag = 'scoped memory for tpu_custom_call.1']
    #allocation7 [shape = 'u8[32768]{0}', space=vmem, size = 0x8000, scoped, tag = 'input window, operand 3, single buffered']
    #allocation8 [shape = 'u8[65536]{0}', space=vmem, size = 0x10000, scoped, tag = 'input window, operand 5, single buffered']
    #allocation9 [shape = 's32[1]{0}', space=sflag, size = 0x4, scoped, tag = 'scoped memory for tpu_custom_call.1']
    #allocation10 [shape = 'u8[65536]{0}', space=vmem, size = 0x10000, scoped, tag = 'input window, operand 7, single buffered']
    #allocation11 [shape = 'u8[8192]{0}', space=vmem, size = 0x2000, scoped, tag = 'output window, operand 0, single buffered']
    #allocation12 [shape = 'u8[16384]{0}', space=vmem, size = 0x4000, scoped, tag = 'output window, operand 1, single buffered']
    #allocation13 [shape = 's32[1]{0}', space=sflag, size = 0x4, scoped, tag = 'scoped memory for tpu_custom_call.1']
    #allocation14 [shape = 'u8[8192]{0}', space=vmem, size = 0x2000, scoped, tag = 'output window, operand 2, single buffered']
    %17 = vsyncpa [#allocation3], 0
    %18 = vsyncpa [#allocation6], 0
    %19 = vsyncpa [#allocation9], 0
    %20 = vsyncpa [#allocation4], 0
    %21 = vsyncpa [#allocation13], 0
    // Predicated region
    $region2: #{tpu_custom_call.1} parent=1 // pred_check
      _
    $region3: #{tpu_custom_call.1} parent=1 // pred_check_branch
      %23 = sbr.rel (0) target = $region5
    $region4: #{tpu_custom_call.1} parent=1 // pred_region
      %s25 = ssub.s32 256, 256
      %26 = vsyncadd [#allocation3], %s25
      %s27 = sshll.u32 [#allocation2], 4
      %s28 = int_to_ptr.vmem [resolvable:$true] %s27
      %33 = dma.hbm_to_vmem [thread:$0]  %s0, 256, %s28, [#allocation3], 128, 128, 8
    $region5: #{tpu_custom_call.1} parent=1 // pred_fallthru
      _
    // Predicated region
    $region6: #{tpu_custom_call.1} parent=1 // pred_check
      _
    $region7: #{tpu_custom_call.1} parent=1 // pred_check_branch
      %35 = sbr.rel (0) target = $region9
    $region8: #{tpu_custom_call.1} parent=1 // pred_region
      %s37 = ssub.s32 2048, 2048
      %38 = vsyncadd [#allocation6], %s37
      %s39 = sshll.u32 [#allocation5], 4
      %s40 = int_to_ptr.vmem [resolvable:$true] %s39
      %45 = dma.hbm_to_vmem [thread:$0]  %s1, 2048, %s40, [#allocation6], 64, 64, 4
    $region9: #{tpu_custom_call.1} parent=1 // pred_fallthru
      _
    // Predicated region
    $region10: #{tpu_custom_call.1} parent=1 // pred_check
      _
    $region11: #{tpu_custom_call.1} parent=1 // pred_check_branch
      %47 = sbr.rel (0) target = $region13
    $region12: #{tpu_custom_call.1} parent=1 // pred_region
      _
    $region13: #{tpu_custom_call.1} parent=1 // pred_fallthru
      _
    // Predicated region
    $region14: #{tpu_custom_call.1} parent=1 // pred_check
      _
    $region15: #{tpu_custom_call.1} parent=1 // pred_check_branch
      %49 = sbr.rel (0) target = $region17
    $region16: #{tpu_custom_call.1} parent=1 // pred_region
      %s51 = ssub.s32 1024, 1024
      %52 = vsyncadd [#allocation6], %s51
      %s53 = sshll.u32 [#allocation7], 4
      %s54 = int_to_ptr.vmem [resolvable:$true] %s53
      %59 = dma.hbm_to_vmem [thread:$0]  %s3, 1024, %s54, [#allocation6], 64, 64, 4
    $region17: #{tpu_custom_call.1} parent=1 // pred_fallthru
      _
    // Predicated region
    $region18: #{tpu_custom_call.1} parent=1 // pred_check
      _
    $region19: #{tpu_custom_call.1} parent=1 // pred_check_branch
      %61 = sbr.rel (0) target = $region21
    $region20: #{tpu_custom_call.1} parent=1 // pred_region
      _
    $region21: #{tpu_custom_call.1} parent=1 // pred_fallthru
      _
    // Predicated region
    $region22: #{tpu_custom_call.1} parent=1 // pred_check
      _
    $region23: #{tpu_custom_call.1} parent=1 // pred_check_branch
      %63 = sbr.rel (0) target = $region25
    $region24: #{tpu_custom_call.1} parent=1 // pred_region
      %s65 = ssub.s32 2048, 2048
      %66 = vsyncadd [#allocation9], %s65
      %s67 = sshll.u32 [#allocation8], 4
      %s68 = int_to_ptr.vmem [resolvable:$true] %s67
      %73 = dma.hbm_to_vmem [thread:$0]  %s5, 2048, %s68, [#allocation9], 128, 128, 8
    $region25: #{tpu_custom_call.1} parent=1 // pred_fallthru
      _
    // Predicated region
    $region26: #{tpu_custom_call.1} parent=1 // pred_check
      _
    $region27: #{tpu_custom_call.1} parent=1 // pred_check_branch
      %75 = sbr.rel (0) target = $region29
    $region28: #{tpu_custom_call.1} parent=1 // pred_region
      _
    $region29: #{tpu_custom_call.1} parent=1 // pred_fallthru
      _
    // Predicated region
    $region30: #{tpu_custom_call.1} parent=1 // pred_check
      _
    $region31: #{tpu_custom_call.1} parent=1 // pred_check_branch
      %77 = sbr.rel (0) target = $region33
    $region32: #{tpu_custom_call.1} parent=1 // pred_region
      %s79 = ssub.s32 2048, 2048
      %80 = vsyncadd [#allocation9], %s79
      %s81 = sshll.u32 [#allocation10], 4
      %s82 = int_to_ptr.vmem [resolvable:$true] %s81
      %87 = dma.hbm_to_vmem [thread:$0]  %s7, 2048, %s82, [#allocation9], 128, 128, 8
    $region33: #{tpu_custom_call.1} parent=1 // pred_fallthru
      _
    // Predicated region
    $region34: #{tpu_custom_call.1} parent=1 // pred_check
      _
    $region35: #{tpu_custom_call.1} parent=1 // pred_check_branch
      %89 = sbr.rel (0) target = $region37
    $region36: #{tpu_custom_call.1} parent=1 // pred_region
      _
    $region37: #{tpu_custom_call.1} parent=1 // pred_fallthru
      _
    // Predicated region
    $region38: #{tpu_custom_call.1} parent=1 // pred_check
      _
    $region39: #{tpu_custom_call.1} parent=1 // pred_check_branch
      %91 = sbr.rel (0) target = $region41
    $region40: #{tpu_custom_call.1} parent=1 // pred_region
      %92 = dma.done [#allocation3], 256
    $region41: #{tpu_custom_call.1} parent=1 // pred_fallthru
      _
    // Predicated region
    $region42: #{tpu_custom_call.1} parent=1 // pred_check
      _
    $region43: #{tpu_custom_call.1} parent=1 // pred_check_branch
      %94 = sbr.rel (0) target = $region45
    $region44: #{tpu_custom_call.1} parent=1 // pred_region
      %95 = dma.done [#allocation6], 2048
    $region45: #{tpu_custom_call.1} parent=1 // pred_fallthru
      _
    // Predicated region
    $region46: #{tpu_custom_call.1} parent=1 // pred_check
      _
    $region47: #{tpu_custom_call.1} parent=1 // pred_check_branch
      %97 = sbr.rel (0) target = $region49
    $region48: #{tpu_custom_call.1} parent=1 // pred_region
      %98 = dma.done [#allocation6], 1024
    $region49: #{tpu_custom_call.1} parent=1 // pred_fallthru
      _
    // Predicated region
    $region50: #{tpu_custom_call.1} parent=1 // pred_check
      _
    $region51: #{tpu_custom_call.1} parent=1 // pred_check_branch
      %100 = sbr.rel (0) target = $region53
    $region52: #{tpu_custom_call.1} parent=1 // pred_region
      %101 = dma.done [#allocation9], 2048
    $region53: #{tpu_custom_call.1} parent=1 // pred_fallthru
      _
    // Predicated region
    $region54: #{tpu_custom_call.1} parent=1 // pred_check
      _
    $region55: #{tpu_custom_call.1} parent=1 // pred_check_branch
      %103 = sbr.rel (0) target = $region57
    $region56: #{tpu_custom_call.1} parent=1 // pred_region
      %104 = dma.done [#allocation9], 2048
    $region57: #{tpu_custom_call.1} parent=1 // pred_fallthru
      _
    %v106 = vld [vmem:[#allocation2] sm:$0xff]
    %v107 = vld [vmem:[#allocation2 + $0x8] sm:$0xff]
    %v108 = vld [vmem:[#allocation5] sm:$0xf]
    %v109 = vld [vmem:[#allocation5 + $0x4] sm:$0xf]
    %v110 = vld [vmem:[#allocation5 + $0x8] sm:$0xf]
    %v111 = vld [vmem:[#allocation5 + $0xc] sm:$0xf]
    %v112 = vld [vmem:[#allocation5 + $0x10] sm:$0xf]
    %v113 = vld [vmem:[#allocation5 + $0x14] sm:$0xf]
    %v114 = vld [vmem:[#allocation5 + $0x18] sm:$0xf]
    %v115 = vld [vmem:[#allocation5 + $0x1c] sm:$0xf]
    %v116 = vld [vmem:[#allocation5 + $0x20] sm:$0xf]
    %v117 = vld [vmem:[#allocation5 + $0x24] sm:$0xf]
    %v118 = vld [vmem:[#allocation5 + $0x28] sm:$0xf]
    %v119 = vld [vmem:[#allocation5 + $0x2c] sm:$0xf]
    %v120 = vld [vmem:[#allocation5 + $0x30] sm:$0xf]
    %v121 = vld [vmem:[#allocation5 + $0x34] sm:$0xf]
    %v122 = vld [vmem:[#allocation5 + $0x38] sm:$0xf]
    %v123 = vld [vmem:[#allocation5 + $0x3c] sm:$0xf]
    %v124 = vld [vmem:[#allocation5 + $0x40] sm:$0xf]
    %v125 = vld [vmem:[#allocation5 + $0x44] sm:$0xf]
    %v126 = vld [vmem:[#allocation5 + $0x48] sm:$0xf]
    %v127 = vld [vmem:[#allocation5 + $0x4c] sm:$0xf]
    %v128 = vld [vmem:[#allocation5 + $0x50] sm:$0xf]
    %v129 = vld [vmem:[#allocation5 + $0x54] sm:$0xf]
    %v130 = vld [vmem:[#allocation5 + $0x58] sm:$0xf]
    %v131 = vld [vmem:[#allocation5 + $0x5c] sm:$0xf]
    %v132 = vld [vmem:[#allocation5 + $0x60] sm:$0xf]
    %v133 = vld [vmem:[#allocation5 + $0x64] sm:$0xf]
    %v134 = vld [vmem:[#allocation5 + $0x68] sm:$0xf]
    %v135 = vld [vmem:[#allocation5 + $0x6c] sm:$0xf]
    %v136 = vld [vmem:[#allocation5 + $0x70] sm:$0xf]
    %v137 = vld [vmem:[#allocation5 + $0x74] sm:$0xf]
    %v138 = vld [vmem:[#allocation5 + $0x78] sm:$0xf]
    %v139 = vld [vmem:[#allocation5 + $0x7c] sm:$0xf]
    %v140 = vld [vmem:[%s2] sm:$0x1]
    %v142 = vlaneseq
    %v143 = vshrl.u32 %v142, 7
    %v144 = vsub.s32 0, %v143
    %v145 = vrot.slane %v140, %v144
    %v149 = vunpack.c.l.b16 %v106
    %v150 = vunpack.c.h.b16 %v106
    %v151 = vunpack.c.l.b16 %v107
    %v152 = vunpack.c.h.b16 %v107
    %v153 = vpack.c.b16 %v151, %v149
    %v154 = vpack.c.b16 %v152, %v150
    %v189 = vunpack.c.l.b16 %v108
    %v190 = vunpack.c.l.b16 %v109
    %v191 = vunpack.c.l.b16 %v110
    %v192 = vunpack.c.l.b16 %v111
    %v193 = vunpack.c.l.b16 %v112
    %v194 = vunpack.c.l.b16 %v113
    %v195 = vunpack.c.l.b16 %v114
    %v196 = vunpack.c.l.b16 %v115
    %v197 = vunpack.c.l.b16 %v116
    %v198 = vunpack.c.l.b16 %v117
    %v199 = vunpack.c.l.b16 %v118
    %v200 = vunpack.c.l.b16 %v119
    %v201 = vunpack.c.l.b16 %v120
    %v202 = vunpack.c.l.b16 %v121
    %v203 = vunpack.c.l.b16 %v122
    %v204 = vunpack.c.l.b16 %v123
    %v205 = vunpack.c.l.b16 %v124
    %v206 = vunpack.c.l.b16 %v125
    %v207 = vunpack.c.l.b16 %v126
    %v208 = vunpack.c.l.b16 %v127
    %v209 = vunpack.c.l.b16 %v128
    %v210 = vunpack.c.l.b16 %v129
    %v211 = vunpack.c.l.b16 %v130
    %v212 = vunpack.c.l.b16 %v131
    %v213 = vunpack.c.l.b16 %v132
    %v214 = vunpack.c.l.b16 %v133
    %v215 = vunpack.c.l.b16 %v134
    %v216 = vunpack.c.l.b16 %v135
    %v217 = vunpack.c.l.b16 %v136
    %v218 = vunpack.c.l.b16 %v137
    %v219 = vunpack.c.l.b16 %v138
    %v220 = vunpack.c.l.b16 %v139
    %v221 = vpack.c.b16 %v190, %v189
    %v222 = vpack.c.b16 %v192, %v191
    %v223 = vpack.c.b16 %v194, %v193
    %v224 = vpack.c.b16 %v196, %v195
    %v225 = vpack.c.b16 %v198, %v197
    %v226 = vpack.c.b16 %v200, %v199
    %v227 = vpack.c.b16 %v202, %v201
    %v228 = vpack.c.b16 %v204, %v203
    %v229 = vpack.c.b16 %v206, %v205
    %v230 = vpack.c.b16 %v208, %v207
    %v231 = vpack.c.b16 %v210, %v209
    %v232 = vpack.c.b16 %v212, %v211
    %v233 = vpack.c.b16 %v214, %v213
    %v234 = vpack.c.b16 %v216, %v215
    %v235 = vpack.c.b16 %v218, %v217
    %v236 = vpack.c.b16 %v220, %v219
    %253 = vmatprep.subr.bf16.mxu0 0
    %254 = vmatpush1.bf16.msra.mxu0 %v221
    %255 = vmatprep.subr.bf16.mxu0 0
    %256 = vmatpush1.bf16.msra.mxu0 %v222
    %257 = vmatprep.subr.bf16.mxu0 0
    %258 = vmatpush1.bf16.msra.mxu0 %v223
    %259 = vmatprep.subr.bf16.mxu0 0
    %260 = vmatpush1.bf16.msra.mxu0 %v224
    %261 = vmatprep.subr.bf16.mxu0 0
    %262 = vmatpush1.bf16.msra.mxu0 %v225
    %263 = vmatprep.subr.bf16.mxu0 0
    %264 = vmatpush1.bf16.msra.mxu0 %v226
    %265 = vmatprep.subr.bf16.mxu0 0
    %266 = vmatpush1.bf16.msra.mxu0 %v227
    %267 = vmatprep.subr.bf16.mxu0 0
    %268 = vmatpush1.bf16.msra.mxu0 %v228
    %269 = vmatprep.subr.bf16.mxu0 0
    %270 = vmatpush1.bf16.msra.mxu0 %v229
    %271 = vmatprep.subr.bf16.mxu0 0
    %272 = vmatpush1.bf16.msra.mxu0 %v230
    %273 = vmatprep.subr.bf16.mxu0 0
    %274 = vmatpush1.bf16.msra.mxu0 %v231
    %275 = vmatprep.subr.bf16.mxu0 0
    %276 = vmatpush1.bf16.msra.mxu0 %v232
    %277 = vmatprep.subr.bf16.mxu0 0
    %278 = vmatpush1.bf16.msra.mxu0 %v233
    %279 = vmatprep.subr.bf16.mxu0 0
    %280 = vmatpush1.bf16.msra.mxu0 %v234
    %281 = vmatprep.subr.bf16.mxu0 0
    %282 = vmatpush1.bf16.msra.mxu0 %v235
    %283 = vmatprep.subr.bf16.mxu0 0
    %284 = vmatpush1.bf16.msra.mxu0 %v236
    %285 = vmatprep.mubr.bf16.mxu0 %v154
    %286 = vmatmul.mubr.bf16.gmra.mrb[0].mxu0 %v153
    %v287 = vpop.f32.mrb[0].mxu0
    %v288 = vadd.f32 %v145, %v287
    %v289 = vpop.f32.mrb[0].mxu0
    %v290 = vpop.f32.mrb[0].mxu0
    %v291 = vadd.f32 %v145, %v290
    %v292 = vpop.f32.mrb[0].mxu0
    %293 = vdwg.mxu0
    %v294 = vmax.f32 %v288, 0.0
    %v295 = vmax.f32 %v291, 0.0
    %v296 = vpack.c.bf16 %v295, %v294
    %v297 = vld [vmem:[#allocation7] sm:$0xf]
    %v298 = vld [vmem:[#allocation7 + $0x4] sm:$0xf]
    %v299 = vld [vmem:[#allocation7 + $0x8] sm:$0xf]
    %v300 = vld [vmem:[#allocation7 + $0xc] sm:$0xf]
    %v301 = vld [vmem:[#allocation7 + $0x10] sm:$0xf]
    %v302 = vld [vmem:[#allocation7 + $0x14] sm:$0xf]
    %v303 = vld [vmem:[#allocation7 + $0x18] sm:$0xf]
    %v304 = vld [vmem:[#allocation7 + $0x1c] sm:$0xf]
    %v305 = vld [vmem:[#allocation7 + $0x20] sm:$0xf]
    %v306 = vld [vmem:[#allocation7 + $0x24] sm:$0xf]
    %v307 = vld [vmem:[#allocation7 + $0x28] sm:$0xf]
    %v308 = vld [vmem:[#allocation7 + $0x2c] sm:$0xf]
    %v309 = vld [vmem:[#allocation7 + $0x30] sm:$0xf]
    %v310 = vld [vmem:[#allocation7 + $0x34] sm:$0xf]
    %v311 = vld [vmem:[#allocation7 + $0x38] sm:$0xf]
    %v312 = vld [vmem:[#allocation7 + $0x3c] sm:$0xf]
    %v313 = vld [vmem:[%s4] sm:$0x1]
    %v315 = vlaneseq
    %v316 = vshrl.u32 %v315, 7
    %v317 = vsub.s32 0, %v316
    %v318 = vrot.slane %v313, %v317
    %v336 = vunpack.c.l.b16 %v297
    %v337 = vunpack.c.l.b16 %v298
    %v338 = vunpack.c.l.b16 %v299
    %v339 = vunpack.c.l.b16 %v300
    %v340 = vunpack.c.l.b16 %v301
    %v341 = vunpack.c.l.b16 %v302
    %v342 = vunpack.c.l.b16 %v303
    %v343 = vunpack.c.l.b16 %v304
    %v344 = vunpack.c.l.b16 %v305
    %v345 = vunpack.c.l.b16 %v306
    %v346 = vunpack.c.l.b16 %v307
    %v347 = vunpack.c.l.b16 %v308
    %v348 = vunpack.c.l.b16 %v309
    %v349 = vunpack.c.l.b16 %v310
    %v350 = vunpack.c.l.b16 %v311
    %v351 = vunpack.c.l.b16 %v312
    %v352 = vpack.c.b16 %v337, %v336
    %v353 = vpack.c.b16 %v339, %v338
    %v354 = vpack.c.b16 %v341, %v340
    %v355 = vpack.c.b16 %v343, %v342
    %v356 = vpack.c.b16 %v345, %v344
    %v357 = vpack.c.b16 %v347, %v346
    %v358 = vpack.c.b16 %v349, %v348
    %v359 = vpack.c.b16 %v351, %v350
    %368 = vmatprep.subr.bf16.mxu0 0
    %369 = vmatpush1.bf16.msra.mxu0 %v352
    %370 = vmatprep.subr.bf16.mxu0 0
    %371 = vmatpush1.bf16.msra.mxu0 %v353
    %372 = vmatprep.subr.bf16.mxu0 0
    %373 = vmatpush1.bf16.msra.mxu0 %v354
    %374 = vmatprep.subr.bf16.mxu0 0
    %375 = vmatpush1.bf16.msra.mxu0 %v355
    %376 = vmatprep.subr.bf16.mxu0 0
    %377 = vmatpush1.bf16.msra.mxu0 %v356
    %378 = vmatprep.subr.bf16.mxu0 0
    %379 = vmatpush1.bf16.msra.mxu0 %v357
    %380 = vmatprep.subr.bf16.mxu0 0
    %381 = vmatpush1.bf16.msra.mxu0 %v358
    %382 = vmatprep.subr.bf16.mxu0 0
    %383 = vmatpush1.bf16.msra.mxu0 %v359
    %384 = vmatprep.subr.bf16.mxu0 0
    %385 = vmatpush1.bf16.msra.mxu0 0
    %386 = vmatprep.subr.bf16.mxu0 0
    %387 = vmatpush1.bf16.msra.mxu0 0
    %388 = vmatprep.subr.bf16.mxu0 0
    %389 = vmatpush1.bf16.msra.mxu0 0
    %390 = vmatprep.subr.bf16.mxu0 0
    %391 = vmatpush1.bf16.msra.mxu0 0
    %392 = vmatprep.subr.bf16.mxu0 0
    %393 = vmatpush1.bf16.msra.mxu0 0
    %394 = vmatprep.subr.bf16.mxu0 0
    %395 = vmatpush1.bf16.msra.mxu0 0
    %396 = vmatprep.subr.bf16.mxu0 0
    %397 = vmatpush1.bf16.msra.mxu0 0
    %398 = vmatprep.subr.bf16.mxu0 0
    %399 = vmatpush1.bf16.msra.mxu0 0
    %400 = vmatprep.mubr.bf16.mxu0 0
    %401 = vmatmul.mubr.bf16.gmra.mrb[0].mxu0 %v296
    %v402 = vpop.f32.mrb[0].mxu0
    %v403 = vadd.f32 %v318, %v402
    %v404 = vpop.f32.mrb[0].mxu0
    %v405 = vpop.f32.mrb[0].mxu0
    %v406 = vadd.f32 %v318, %v405
    %v407 = vpop.f32.mrb[0].mxu0
    %408 = vdwg.mxu0
    %v409 = vmax.f32 %v403, 0.0
    %v410 = vmax.f32 %v406, 0.0
    %v411 = vpack.c.bf16 %v410, %v409
    %v412 = vld [vmem:[#allocation8] sm:$0xff]
    %v413 = vld [vmem:[#allocation8 + $0x8] sm:$0xff]
    %v414 = vld [vmem:[#allocation8 + $0x10] sm:$0xff]
    %v415 = vld [vmem:[#allocation8 + $0x18] sm:$0xff]
    %v416 = vld [vmem:[#allocation8 + $0x20] sm:$0xff]
    %v417 = vld [vmem:[#allocation8 + $0x28] sm:$0xff]
    %v418 = vld [vmem:[#allocation8 + $0x30] sm:$0xff]
    %v419 = vld [vmem:[#allocation8 + $0x38] sm:$0xff]
    %v420 = vld [vmem:[#allocation8 + $0x40] sm:$0xff]
    %v421 = vld [vmem:[#allocation8 + $0x48] sm:$0xff]
    %v422 = vld [vmem:[#allocation8 + $0x50] sm:$0xff]
    %v423 = vld [vmem:[#allocation8 + $0x58] sm:$0xff]
    %v424 = vld [vmem:[#allocation8 + $0x60] sm:$0xff]
    %v425 = vld [vmem:[#allocation8 + $0x68] sm:$0xff]
    %v426 = vld [vmem:[#allocation8 + $0x70] sm:$0xff]
    %v427 = vld [vmem:[#allocation8 + $0x78] sm:$0xff]
    %v428 = vld [vmem:[%s6] sm:$0x3]
    %v430 = vlaneseq
    %v431 = vshrl.u32 %v430, 7
    %v432 = vsub.s32 0, %v431
    %v433 = vrot.slane %v428, %v432
    %v434 = vlaneseq
    %v435 = vshrl.u32 %v434, 7
    %v436 = vsub.s32 1, %v435
    %v437 = vrot.slane %v428, %v436
    %v456 = vunpack.c.l.b16 %v412
    %v457 = vunpack.c.h.b16 %v412
    %v458 = vunpack.c.l.b16 %v413
    %v459 = vunpack.c.h.b16 %v413
    %v460 = vunpack.c.l.b16 %v414
    %v461 = vunpack.c.h.b16 %v414
    %v462 = vunpack.c.l.b16 %v415
    %v463 = vunpack.c.h.b16 %v415
    %v464 = vunpack.c.l.b16 %v416
    %v465 = vunpack.c.h.b16 %v416
    %v466 = vunpack.c.l.b16 %v417
    %v467 = vunpack.c.h.b16 %v417
    %v468 = vunpack.c.l.b16 %v418
    %v469 = vunpack.c.h.b16 %v418
    %v470 = vunpack.c.l.b16 %v419
    %v471 = vunpack.c.h.b16 %v419
    %v472 = vunpack.c.l.b16 %v420
    %v473 = vunpack.c.h.b16 %v420
    %v474 = vunpack.c.l.b16 %v421
    %v475 = vunpack.c.h.b16 %v421
    %v476 = vunpack.c.l.b16 %v422
    %v477 = vunpack.c.h.b16 %v422
    %v478 = vunpack.c.l.b16 %v423
    %v479 = vunpack.c.h.b16 %v423
    %v480 = vunpack.c.l.b16 %v424
    %v481 = vunpack.c.h.b16 %v424
    %v482 = vunpack.c.l.b16 %v425
    %v483 = vunpack.c.h.b16 %v425
    %v484 = vunpack.c.l.b16 %v426
    %v485 = vunpack.c.h.b16 %v426
    %v486 = vunpack.c.l.b16 %v427
    %v487 = vunpack.c.h.b16 %v427
    %v488 = vpack.c.b16 %v458, %v456
    %v489 = vpack.c.b16 %v459, %v457
    %v490 = vpack.c.b16 %v462, %v460
    %v491 = vpack.c.b16 %v463, %v461
    %v492 = vpack.c.b16 %v466, %v464
    %v493 = vpack.c.b16 %v467, %v465
    %v494 = vpack.c.b16 %v470, %v468
    %v495 = vpack.c.b16 %v471, %v469
    %v496 = vpack.c.b16 %v474, %v472
    %v497 = vpack.c.b16 %v475, %v473
    %v498 = vpack.c.b16 %v478, %v476
    %v499 = vpack.c.b16 %v479, %v477
    %v500 = vpack.c.b16 %v482, %v480
    %v501 = vpack.c.b16 %v483, %v481
    %v502 = vpack.c.b16 %v486, %v484
    %v503 = vpack.c.b16 %v487, %v485
    %520 = vmatprep.subr.bf16.mxu0 %v489
    %521 = vmatpush1.bf16.msra.mxu0 %v488
    %522 = vmatprep.subr.bf16.mxu0 %v491
    %523 = vmatpush1.bf16.msra.mxu0 %v490
    %524 = vmatprep.subr.bf16.mxu0 %v493
    %525 = vmatpush1.bf16.msra.mxu0 %v492
    %526 = vmatprep.subr.bf16.mxu0 %v495
    %527 = vmatpush1.bf16.msra.mxu0 %v494
    %528 = vmatprep.subr.bf16.mxu0 %v497
    %529 = vmatpush1.bf16.msra.mxu0 %v496
    %530 = vmatprep.subr.bf16.mxu0 %v499
    %531 = vmatpush1.bf16.msra.mxu0 %v498
    %532 = vmatprep.subr.bf16.mxu0 %v501
    %533 = vmatpush1.bf16.msra.mxu0 %v500
    %534 = vmatprep.subr.bf16.mxu0 %v503
    %535 = vmatpush1.bf16.msra.mxu0 %v502
    %536 = vmatprep.subr.bf16.mxu0 0
    %537 = vmatpush1.bf16.msra.mxu0 0
    %538 = vmatprep.subr.bf16.mxu0 0
    %539 = vmatpush1.bf16.msra.mxu0 0
    %540 = vmatprep.subr.bf16.mxu0 0
    %541 = vmatpush1.bf16.msra.mxu0 0
    %542 = vmatprep.subr.bf16.mxu0 0
    %543 = vmatpush1.bf16.msra.mxu0 0
    %544 = vmatprep.subr.bf16.mxu0 0
    %545 = vmatpush1.bf16.msra.mxu0 0
    %546 = vmatprep.subr.bf16.mxu0 0
    %547 = vmatpush1.bf16.msra.mxu0 0
    %548 = vmatprep.subr.bf16.mxu0 0
    %549 = vmatpush1.bf16.msra.mxu0 0
    %550 = vmatprep.subr.bf16.mxu0 0
    %551 = vmatpush1.bf16.msra.mxu0 0
    %552 = vmatprep.mubr.bf16.mxu0 0
    %553 = vmatmul.mubr.bf16.gmra.mrb[0].mxu0 %v411
    %v554 = vpop.f32.mrb[0].mxu0
    %v555 = vadd.f32 %v433, %v554
    %v556 = vpop.f32.mrb[0].mxu0
    %v557 = vadd.f32 %v437, %v556
    %v558 = vpop.f32.mrb[0].mxu0
    %v559 = vadd.f32 %v433, %v558
    %v560 = vpop.f32.mrb[0].mxu0
    %v561 = vadd.f32 %v437, %v560
    %562 = vdwg.mxu0
    %v563 = vmax.f32 %v555, 0.0
    %v564 = vmax.f32 %v559, 0.0
    %v565 = vtanh.pop %v557
    %v566 = vtanh.pop %v561
    %v567 = vpack.c.bf16 %v564, %v563
    %v568 = vld [vmem:[#allocation10] sm:$0xff]
    %v569 = vld [vmem:[#allocation10 + $0x8] sm:$0xff]
    %v570 = vld [vmem:[#allocation10 + $0x10] sm:$0xff]
    %v571 = vld [vmem:[#allocation10 + $0x18] sm:$0xff]
    %v572 = vld [vmem:[#allocation10 + $0x20] sm:$0xff]
    %v573 = vld [vmem:[#allocation10 + $0x28] sm:$0xff]
    %v574 = vld [vmem:[#allocation10 + $0x30] sm:$0xff]
    %v575 = vld [vmem:[#allocation10 + $0x38] sm:$0xff]
    %v576 = vld [vmem:[#allocation10 + $0x40] sm:$0xff]
    %v577 = vld [vmem:[#allocation10 + $0x48] sm:$0xff]
    %v578 = vld [vmem:[#allocation10 + $0x50] sm:$0xff]
    %v579 = vld [vmem:[#allocation10 + $0x58] sm:$0xff]
    %v580 = vld [vmem:[#allocation10 + $0x60] sm:$0xff]
    %v581 = vld [vmem:[#allocation10 + $0x68] sm:$0xff]
    %v582 = vld [vmem:[#allocation10 + $0x70] sm:$0xff]
    %v583 = vld [vmem:[#allocation10 + $0x78] sm:$0xff]
    %v584 = vld [vmem:[%s8] sm:$0x3]
    %v586 = vlaneseq
    %v587 = vshrl.u32 %v586, 7
    %v588 = vsub.s32 0, %v587
    %v589 = vrot.slane %v584, %v588
    %v590 = vlaneseq
    %v591 = vshrl.u32 %v590, 7
    %v592 = vsub.s32 1, %v591
    %v593 = vrot.slane %v584, %v592
    %v612 = vunpack.c.l.b16 %v568
    %v613 = vunpack.c.h.b16 %v568
    %v614 = vunpack.c.l.b16 %v569
    %v615 = vunpack.c.h.b16 %v569
    %v616 = vunpack.c.l.b16 %v570
    %v617 = vunpack.c.h.b16 %v570
    %v618 = vunpack.c.l.b16 %v571
    %v619 = vunpack.c.h.b16 %v571
    %v620 = vunpack.c.l.b16 %v572
    %v621 = vunpack.c.h.b16 %v572
    %v622 = vunpack.c.l.b16 %v573
    %v623 = vunpack.c.h.b16 %v573
    %v624 = vunpack.c.l.b16 %v574
    %v625 = vunpack.c.h.b16 %v574
    %v626 = vunpack.c.l.b16 %v575
    %v627 = vunpack.c.h.b16 %v575
    %v628 = vunpack.c.l.b16 %v576
    %v629 = vunpack.c.h.b16 %v576
    %v630 = vunpack.c.l.b16 %v577
    %v631 = vunpack.c.h.b16 %v577
    %v632 = vunpack.c.l.b16 %v578
    %v633 = vunpack.c.h.b16 %v578
    %v634 = vunpack.c.l.b16 %v579
    %v635 = vunpack.c.h.b16 %v579
    %v636 = vunpack.c.l.b16 %v580
    %v637 = vunpack.c.h.b16 %v580
    %v638 = vunpack.c.l.b16 %v581
    %v639 = vunpack.c.h.b16 %v581
    %v640 = vunpack.c.l.b16 %v582
    %v641 = vunpack.c.h.b16 %v582
    %v642 = vunpack.c.l.b16 %v583
    %v643 = vunpack.c.h.b16 %v583
    %v644 = vpack.c.b16 %v614, %v612
    %v645 = vpack.c.b16 %v615, %v613
    %v646 = vpack.c.b16 %v618, %v616
    %v647 = vpack.c.b16 %v619, %v617
    %v648 = vpack.c.b16 %v622, %v620
    %v649 = vpack.c.b16 %v623, %v621
    %v650 = vpack.c.b16 %v626, %v624
    %v651 = vpack.c.b16 %v627, %v625
    %v652 = vpack.c.b16 %v630, %v628
    %v653 = vpack.c.b16 %v631, %v629
    %v654 = vpack.c.b16 %v634, %v632
    %v655 = vpack.c.b16 %v635, %v633
    %v656 = vpack.c.b16 %v638, %v636
    %v657 = vpack.c.b16 %v639, %v637
    %v658 = vpack.c.b16 %v642, %v640
    %v659 = vpack.c.b16 %v643, %v641
    %676 = vmatprep.subr.bf16.mxu0 %v645
    %677 = vmatpush1.bf16.msra.mxu0 %v644
    %678 = vmatprep.subr.bf16.mxu0 %v647
    %679 = vmatpush1.bf16.msra.mxu0 %v646
    %680 = vmatprep.subr.bf16.mxu0 %v649
    %681 = vmatpush1.bf16.msra.mxu0 %v648
    %682 = vmatprep.subr.bf16.mxu0 %v651
    %683 = vmatpush1.bf16.msra.mxu0 %v650
    %684 = vmatprep.subr.bf16.mxu0 %v653
    %685 = vmatpush1.bf16.msra.mxu0 %v652
    %686 = vmatprep.subr.bf16.mxu0 %v655
    %687 = vmatpush1.bf16.msra.mxu0 %v654
    %688 = vmatprep.subr.bf16.mxu0 %v657
    %689 = vmatpush1.bf16.msra.mxu0 %v656
    %690 = vmatprep.subr.bf16.mxu0 %v659
    %691 = vmatpush1.bf16.msra.mxu0 %v658
    %692 = vmatprep.subr.bf16.mxu0 0
    %693 = vmatpush1.bf16.msra.mxu0 0
    %694 = vmatprep.subr.bf16.mxu0 0
    %695 = vmatpush1.bf16.msra.mxu0 0
    %696 = vmatprep.subr.bf16.mxu0 0
    %697 = vmatpush1.bf16.msra.mxu0 0
    %698 = vmatprep.subr.bf16.mxu0 0
    %699 = vmatpush1.bf16.msra.mxu0 0
    %700 = vmatprep.subr.bf16.mxu0 0
    %701 = vmatpush1.bf16.msra.mxu0 0
    %702 = vmatprep.subr.bf16.mxu0 0
    %703 = vmatpush1.bf16.msra.mxu0 0
    %704 = vmatprep.subr.bf16.mxu0 0
    %705 = vmatpush1.bf16.msra.mxu0 0
    %706 = vmatprep.subr.bf16.mxu0 0
    %707 = vmatpush1.bf16.msra.mxu0 0
    %708 = vmatprep.mubr.bf16.mxu0 0
    %709 = vmatmul.mubr.bf16.gmra.mrb[0].mxu0 %v567
    %v710 = vpop.f32.mrb[0].mxu0
    %v711 = vadd.f32 %v589, %v710
    %v712 = vpop.f32.mrb[0].mxu0
    %v713 = vadd.f32 %v593, %v712
    %v714 = vpop.f32.mrb[0].mxu0
    %v715 = vadd.f32 %v589, %v714
    %v716 = vpop.f32.mrb[0].mxu0
    %v717 = vadd.f32 %v593, %v716
    %718 = vdwg.mxu0
    %v719 = vmax.f32 %v711, 0.0
    %v720 = vmax.f32 %v713, 0.0
    %v721 = vmax.f32 %v715, 0.0
    %v722 = vmax.f32 %v717, 0.0
    %723 = vst [vmem:[#allocation11] sm:$0xff] %v409
    %724 = vst [vmem:[#allocation11 + $0x8] sm:$0xff] %v410
    %725 = vst [vmem:[#allocation12] sm:$0xff] %v719
    %726 = vst [vmem:[#allocation12 + $0x8] sm:$0xff] %v720
    %727 = vst [vmem:[#allocation12 + $0x10] sm:$0xff] %v721
    %728 = vst [vmem:[#allocation12 + $0x18] sm:$0xff] %v722
    %729 = vst [vmem:[#allocation14] sm:$0xff] %v565
    %730 = vst [vmem:[#allocation14 + $0x8] sm:$0xff] %v566
    // Predicated region
    $region58: #{tpu_custom_call.1} parent=1 // pred_check
      _
    $region59: #{tpu_custom_call.1} parent=1 // pred_check_branch
      %732 = sbr.rel (0) target = $region61
    $region60: #{tpu_custom_call.1} parent=1 // pred_region
      %s734 = ssub.s32 256, 256
      %735 = vsyncadd [#allocation4], %s734
      %s736 = sshll.u32 [#allocation11], 4
      %s737 = int_to_ptr.vmem [resolvable:$true] %s736
      %742 = dma.vmem_to_hbm [thread:$0]  %s737, 256, %s9, [#allocation4], 128, 128, 8
    $region61: #{tpu_custom_call.1} parent=1 // pred_fallthru
      _
    // Predicated region
    $region62: #{tpu_custom_call.1} parent=1 // pred_check
      _
    $region63: #{tpu_custom_call.1} parent=1 // pred_check_branch
      %744 = sbr.rel (0) target = $region65
    $region64: #{tpu_custom_call.1} parent=1 // pred_region
      %s746 = ssub.s32 512, 512
      %747 = vsyncadd [#allocation13], %s746
      %s748 = sshll.u32 [#allocation12], 4
      %s749 = int_to_ptr.vmem [resolvable:$true] %s748
      %754 = dma.vmem_to_hbm [thread:$0]  %s749, 512, %s10, [#allocation13], 256, 256, 16
    $region65: #{tpu_custom_call.1} parent=1 // pred_fallthru
      _
    // Predicated region
    $region66: #{tpu_custom_call.1} parent=1 // pred_check
      _
    $region67: #{tpu_custom_call.1} parent=1 // pred_check_branch
      %756 = sbr.rel (0) target = $region69
    $region68: #{tpu_custom_call.1} parent=1 // pred_region
      %s758 = ssub.s32 256, 256
      %759 = vsyncadd [#allocation13], %s758
      %s760 = sshll.u32 [#allocation14], 4
      %s761 = int_to_ptr.vmem [resolvable:$true] %s760
      %766 = dma.vmem_to_hbm [thread:$0]  %s761, 256, %s11, [#allocation13], 128, 128, 8
    $region69: #{tpu_custom_call.1} parent=1 // pred_fallthru
      _
    // Predicated region
    $region70: #{tpu_custom_call.1} parent=1 // pred_check
      _
    $region71: #{tpu_custom_call.1} parent=1 // pred_check_branch
      %768 = sbr.rel (0) target = $region73
    $region72: #{tpu_custom_call.1} parent=1 // pred_region
      %769 = dma.done [#allocation4], 256
    $region73: #{tpu_custom_call.1} parent=1 // pred_fallthru
      _
    // Predicated region
    $region74: #{tpu_custom_call.1} parent=1 // pred_check
      _
    $region75: #{tpu_custom_call.1} parent=1 // pred_check_branch
      %771 = sbr.rel (0) target = $region77
    $region76: #{tpu_custom_call.1} parent=1 // pred_region
      %772 = dma.done [#allocation13], 512
    $region77: #{tpu_custom_call.1} parent=1 // pred_fallthru
      _
    // Predicated region
    $region78: #{tpu_custom_call.1} parent=1 // pred_check
      _
    $region79: #{tpu_custom_call.1} parent=1 // pred_check_branch
      %774 = sbr.rel (0) target = $region81
    $region80: #{tpu_custom_call.1} parent=1 // pred_region
      %775 = dma.done [#allocation13], 256
    $region81: #{tpu_custom_call.1} parent=1 // pred_fallthru
      _
    %776 = vsyncpa [#allocation3], 1
    %777 = vsyncpa [#allocation6], 1
    %778 = vsyncpa [#allocation9], 1
    %779 = vsyncpa [#allocation4], 1
    %780 = vsyncpa [#allocation13], 1

</llo_original>
